<compile_context>
chip_gen: v6e
topology: v6e:2x2x1
jax: 0.10.0
libtpu: 0.0.40
codegen_flags: <defaults>
</compile_context>

<pallas_src>
import jax
import jax.numpy as jnp
from jax.experimental import pallas as pl
from jax.experimental.pallas import tpu as pltpu


def _make_attention_kernel(nl, l_tile, seq_len):
    """Returns the kernel body, closed over static chunk geometry (Python ints)."""

    def kernel(v_ref, len_ref, enc_ref, out_ref, sc_ref):
        # v_ref:   (bt, E)  f32            fused query projection  v = hidden @ W
        # len_ref: (bt, 1)  i32            valid sequence length per row
        # enc_ref: (bt, Lt, E)             encoder outputs, native dtype, chunk `l`
        # out_ref: (bt, L)                 softmax weights (resident across chunks)
        # sc_ref:  (max(nl-1,1), bt, Lt)   f32 staged masked scores (VMEM scratch)
        l = pl.program_id(1)

        v = v_ref[...].astype(jnp.float32)                     # (bt, E)
        enc = enc_ref[...].astype(jnp.float32)                 # (bt, Lt, E)
        # scores[b, j] = sum_e enc[b, j, e] * v[b, e]  (VPU mul + lane reduce);
        # the f32 temporaries never exceed one (bt, Lt, E) chunk.
        chunk = jnp.sum(enc * v[:, None, :], axis=-1)          # (bt, Lt) f32

        # Mask positions >= length[b].  This also covers the ragged tail of the
        # last L chunk (the enc block may overshoot L; garbage there is masked).
        pos = jax.lax.broadcasted_iota(jnp.int32, chunk.shape, 1) + l * l_tile
        chunk = jnp.where(pos < len_ref[...], chunk, jnp.float32(-1e30))

        if nl > 1:
            @pl.when(l < nl - 1)
            def _stage():
                sc_ref[l] = chunk                              # dynamic leading index

        @pl.when(l == nl - 1)
        def _finalize():
            # All chunks of this batch tile are available; exact softmax over L.
            parts = [sc_ref[i] for i in range(nl - 1)] + [chunk]
            m = parts[0].max(axis=-1, keepdims=True)
            for p in parts[1:]:
                m = jnp.maximum(m, p.max(axis=-1, keepdims=True))
            exps = [jnp.exp(p - m) for p in parts]
            den = exps[0].sum(axis=-1, keepdims=True)
            for e in exps[1:]:
                den = den + e.sum(axis=-1, keepdims=True)
            inv = 1.0 / den                      # exact: output rows sum to 1
            for i, e in enumerate(exps):         # static lane slices of the output
                start = i * l_tile
                width = min(l_tile, seq_len - start)
                out_ref[:, start:start + width] = (
                    e[:, :width] * inv).astype(out_ref.dtype)

    return kernel


def vision_attention(hidden, weight, enc_output, length=None, *,
                     out_dtype=jnp.float32,
                     enc_block_bytes=4 * 1024 * 1024):
    """hidden: (B, D); weight: (D, E) [torch Linear weight (out, in)];
    enc_output: (B, L, E); length: optional (B,) int lengths.
    Returns (B, L) softmax attention weights.

    Note: rows with length == 0 produce a uniform row (the PyTorch reference
    yields NaN for such rows)."""
    B, L, E = enc_output.shape
    D = hidden.shape[1]
    assert weight.shape == (D, E), "weight must be (dec_hid_dim, enc_hid_dim)"

    # Hoisted query projection: one tiny XLA matmul over the whole batch.
    v = jnp.einsum("bd,de->be", hidden.astype(jnp.float32),
                   weight.astype(jnp.float32),
                   precision=jax.lax.Precision.HIGHEST)        # (B, E) f32

    el = jnp.dtype(enc_output.dtype).itemsize

    # ---- Batch tile ----
    if B <= 8:
        bt = B                      # blocks equal the full batch dim: no padding
    else:
        bt = 8
        # Grow while a full-L enc block still fits the budget and >= 2 batch
        # tiles remain (pipelining; both v7x TensorCores get work).
        while bt < 128 and B > 2 * bt and 2 * bt * L * E * el <= enc_block_bytes:
            bt *= 2
    nb = -(-B // bt)
    Bp = nb * bt

    # ---- L chunking (streams enc; bounds VMEM for long sequences) ----
    if bt * L * E * el <= enc_block_bytes:
        l_tile, nl = L, 1
    else:
        l_tile = max(8, (enc_block_bytes // (bt * E * el)) // 8 * 8)
        nl = -(-L // l_tile)
    # (For extremely long L the unrolled finalize grows with nl; an online
    #  running-max/sum variant would bound it — not needed at these sizes.)

    # Pad only the small per-row arrays (v, lengths); enc stays untouched.
    if length is None:
        lens = jnp.full((B, 1), L, dtype=jnp.int32)
    else:
        lens = jnp.asarray(length, dtype=jnp.int32).reshape(B, 1)
    if Bp != B:
        v = jnp.pad(v, ((0, Bp - B), (0, 0)))
        lens = jnp.pad(lens, ((0, Bp - B), (0, 0)))   # padded rows fully masked

    # VMEM plan: enc double-buffer + per-chunk f32 temporaries + staged scores +
    # resident output block.  Conservative clamp is safe on v5e/v6e/v7x.
    vmem_est = (2 * bt * l_tile * E * el            # enc double buffer
                + 2 * bt * l_tile * E * 4           # f32 upcast + product (transient)
                + max(nl - 1, 1) * bt * l_tile * 4  # staged scores
                + (nl + 2) * bt * l_tile * 4        # finalize exp chunks
                + 2 * bt * L * 4                    # resident output block
                + 2 * bt * (E + 1) * 4)             # v + lengths
    vmem_limit = int(min(max(2 * vmem_est, 16 * 1024 * 1024), 40 * 1024 * 1024))

    kernel = _make_attention_kernel(nl, l_tile, L)
    out = pl.pallas_call(
        kernel,
        out_shape=jax.ShapeDtypeStruct((Bp, L), out_dtype),
        grid_spec=pltpu.PrefetchScalarGridSpec(
            num_scalar_prefetch=0,
            grid=(nb, nl),
            in_specs=[
                pl.BlockSpec((bt, E), lambda b, l: (b, 0)),             # v
                pl.BlockSpec((bt, 1), lambda b, l: (b, 0)),             # lengths
                pl.BlockSpec((bt, l_tile, E), lambda b, l: (b, l, 0)),  # enc stream
            ],
            out_specs=pl.BlockSpec((bt, L), lambda b, l: (b, 0)),
            scratch_shapes=[pltpu.VMEM((max(nl - 1, 1), bt, l_tile), jnp.float32)],
        ),
        compiler_params=pltpu.CompilerParams(
            dimension_semantics=("parallel", "arbitrary"),
            vmem_limit_bytes=vmem_limit),
    )(v, lens, enc_output)
    return out[:B]


def vision_attention_ref(hidden, weight, enc_output, length=None):
    proj = jnp.einsum("ble,de->bld", enc_output, weight,
                      precision=jax.lax.Precision.HIGHEST)
    scores = jnp.sum(hidden[:, None, :] * proj, axis=2)
    if length is not None:
        L = enc_output.shape[1]
        mask = jnp.arange(L)[None, :] >= jnp.asarray(length)[:, None]
        scores = jnp.where(mask, -jnp.inf, scores)
    return jax.nn.softmax(scores, axis=1)


if __name__ == "__main__":
    # Small shapes consistent with the module's forward.
    bs, max_len = 2, 8
    enc_hid_dim, dec_hid_dim = 32, 32

    key = jax.random.PRNGKey(0)
    k_h, k_enc, k_w, k_h2, k_e2, k_w2 = jax.random.split(key, 6)

    hidden = jax.random.normal(k_h, (bs, dec_hid_dim), dtype=jnp.float32)
    enc_output = jax.random.normal(
        k_enc, (bs, max_len, enc_hid_dim), dtype=jnp.float32)
    # nn.Linear(enc_hid_dim, dec_hid_dim, bias=False) weight: (out, in) = (D, E).
    bound = 1.0 / (enc_hid_dim ** 0.5)
    weight = jax.random.uniform(
        k_w, (dec_hid_dim, enc_hid_dim), dtype=jnp.float32,
        minval=-bound, maxval=bound)

    # 1) No length mask.
    out = jax.block_until_ready(vision_attention(hidden, weight, enc_output))
    ref = vision_attention_ref(hidden, weight, enc_output)
    assert out.shape == (bs, max_len)
    assert jnp.allclose(out, ref, atol=1e-3, rtol=1e-3)
    assert jnp.allclose(jnp.sum(out, axis=1), jnp.ones((bs,)), atol=1e-3)

    # 2) With the optional `length` padding mask.
    length = jnp.array([5, 8], dtype=jnp.int32)
    out_m = jax.block_until_ready(
        vision_attention(hidden, weight, enc_output, length))
    ref_m = vision_attention_ref(hidden, weight, enc_output, length)
    assert jnp.allclose(out_m, ref_m, atol=1e-3, rtol=1e-3)
    assert jnp.allclose(out_m[0, 5:], jnp.zeros((3,)), atol=1e-6)

    # 3) Larger shapes exercising batch tiling + L-chunk streaming + ragged L
    #    (small enc_block_bytes forces the multi-chunk path).
    B2, L2, E2, D2 = 16, 250, 32, 48
    hidden2 = jax.random.normal(k_h2, (B2, D2), dtype=jnp.float32)
    enc2 = jax.random.normal(k_e2, (B2, L2, E2), dtype=jnp.float32)
    w2 = jax.random.uniform(k_w2, (D2, E2), dtype=jnp.float32,
                            minval=-0.1, maxval=0.1)
    length2 = (jnp.arange(B2, dtype=jnp.int32) * 15) % L2 + 1
    out2 = jax.block_until_ready(
        vision_attention(hidden2, w2, enc2, length2, enc_block_bytes=64 * 1024))
    ref2 = vision_attention_ref(hidden2, w2, enc2, length2)
    assert out2.shape == (B2, L2)
    assert jnp.allclose(out2, ref2, atol=1e-3, rtol=1e-3)
    assert jnp.allclose(jnp.sum(out2, axis=1), jnp.ones((B2,)), atol=1e-3)

    print("KERNEL_OK")
</pallas_src>

<mosaic_0001>
module attributes {stable_mosaic.version = 11 : i64} {
  func.func @kernel(%arg0: i32, %arg1: i32, %arg2: memref<2x32xf32, #tpu.memory_space<vmem>>, %arg3: memref<2x1xi32, #tpu.memory_space<vmem>>, %arg4: memref<2x8x32xf32, #tpu.memory_space<vmem>>, %arg5: memref<2x8xf32, #tpu.memory_space<vmem>>, %arg6: memref<1x2x8xf32, #tpu.memory_space<vmem>>) attributes {dimension_semantics = [#tpu.dimension_semantics<parallel>, #tpu.dimension_semantics<arbitrary>], iteration_bounds = array<i64: 1, 1>, scalar_prefetch = 0 : i64, scratch_operands = 1 : i64, tpu.core_type = #tpu.core_type<tc>, window_params = [{transform_indices = @transform_0, window_bounds = array<i64: 2, 32>}, {transform_indices = @transform_1, window_bounds = array<i64: 2, 1>}, {transform_indices = @transform_2, window_bounds = array<i64: 2, 8, 32>}, {transform_indices = @transform_3, window_bounds = array<i64: 2, 8>}]} {
    %c0 = arith.constant 0 : index
    %c0_0 = arith.constant 0 : index
    %0 = vector.load %arg2[%c0, %c0_0] : memref<2x32xf32, #tpu.memory_space<vmem>>, vector<2x32xf32>
    %c0_1 = arith.constant 0 : index
    %c0_2 = arith.constant 0 : index
    %c0_3 = arith.constant 0 : index
    %1 = vector.load %arg4[%c0_1, %c0_2, %c0_3] : memref<2x8x32xf32, #tpu.memory_space<vmem>>, vector<2x8x32xf32>
    %2 = vector.shape_cast %0 : vector<2x32xf32> to vector<2x1x32xf32>
    %3 = vector.broadcast %2 : vector<2x1x32xf32> to vector<2x8x32xf32>
    %4 = arith.mulf %1, %3 : vector<2x8x32xf32>
    %cst = arith.constant dense<0.000000e+00> : vector<2x8xf32>
    %5 = vector.multi_reduction <add>, %4, %cst [2] : vector<2x8x32xf32> to vector<2x8xf32>
    %6 = tpu.iota {dimensions = array<i32: 1>} : vector<2x8xi32>
    %c8_i32 = arith.constant 8 : i32
    %7 = arith.muli %arg1, %c8_i32 : i32
    %8 = vector.broadcast %7 : i32 to vector<2x8xi32>
    %9 = arith.addi %6, %8 : vector<2x8xi32>
    %c0_4 = arith.constant 0 : index
    %c0_5 = arith.constant 0 : index
    %10 = vector.load %arg3[%c0_4, %c0_5] : memref<2x1xi32, #tpu.memory_space<vmem>>, vector<2x1xi32>
    %11 = vector.broadcast %10 : vector<2x1xi32> to vector<2x8xi32>
    %12 = arith.cmpi slt, %9, %11 : vector<2x8xi32>
    %cst_6 = arith.constant -1.000000e+30 : f32
    %13 = vector.broadcast %cst_6 : f32 to vector<2x8xf32>
    %14 = arith.select %12, %5, %13 : vector<2x8xi1>, vector<2x8xf32>
    %c0_i32 = arith.constant 0 : i32
    %15 = arith.cmpi eq, %arg1, %c0_i32 : i32
    %16 = arith.extui %15 : i1 to i32
    %c0_i32_7 = arith.constant 0 : i32
    %17 = arith.cmpi ne, %16, %c0_i32_7 : i32
    scf.if %17 {
      %cst_8 = arith.constant dense<0xFF800000> : vector<2xf32>
      %18 = vector.multi_reduction <maximumf>, %14, %cst_8 [1] : vector<2x8xf32> to vector<2xf32>
      %19 = vector.shape_cast %18 : vector<2xf32> to vector<2x1xf32>
      %20 = vector.broadcast %19 : vector<2x1xf32> to vector<2x8xf32>
      %21 = arith.subf %14, %20 : vector<2x8xf32>
      %22 = math.exp %21 : vector<2x8xf32>
      %cst_9 = arith.constant dense<0.000000e+00> : vector<2xf32>
      %23 = vector.multi_reduction <add>, %22, %cst_9 [1] : vector<2x8xf32> to vector<2xf32>
      %24 = vector.shape_cast %23 : vector<2xf32> to vector<2x1xf32>
      %cst_10 = arith.constant 1.000000e+00 : f32
      %25 = vector.broadcast %cst_10 : f32 to vector<2x1xf32>
      %26 = arith.divf %25, %24 : vector<2x1xf32>
      %27 = vector.broadcast %26 : vector<2x1xf32> to vector<2x8xf32>
      %28 = arith.mulf %22, %27 : vector<2x8xf32>
      %c0_11 = arith.constant 0 : index
      %c0_12 = arith.constant 0 : index
      %29 = vector.load %arg5[%c0_11, %c0_12] : memref<2x8xf32, #tpu.memory_space<vmem>>, vector<2x8xf32>
      tpu.vector_store %arg5[%c0_11, %c0_12], %28 {strides = array<i32>} : memref<2x8xf32, #tpu.memory_space<vmem>>, vector<2x8xf32>,
    } else {
    }
    return
  }
  func.func @transform_0(%arg0: i32, %arg1: i32) -> (i32, i32) {
    %c0_i32 = arith.constant 0 : i32
    %c0_i32_0 = arith.constant 0 : i32
    return %arg0, %c0_i32 : i32, i32
  }
  func.func @transform_1(%arg0: i32, %arg1: i32) -> (i32, i32) {
    %c0_i32 = arith.constant 0 : i32
    %c0_i32_0 = arith.constant 0 : i32
    return %arg0, %c0_i32 : i32, i32
  }
  func.func @transform_2(%arg0: i32, %arg1: i32) -> (i32, i32, i32) {
    %c0_i32 = arith.constant 0 : i32
    %c0_i32_0 = arith.constant 0 : i32
    return %arg0, %arg1, %c0_i32 : i32, i32, i32
  }
  func.func @transform_3(%arg0: i32, %arg1: i32) -> (i32, i32) {
    %c0_i32 = arith.constant 0 : i32
    %c0_i32_0 = arith.constant 0 : i32
    return %arg0, %c0_i32 : i32, i32
  }
}

</mosaic_0001>

<llo_original>
// kernel: tpu_custom_call.1
$region0: #{tpu_custom_call.1}
  #allocation0 [shape = 'u32[]', space=smem, size = 0x4, offset = 0x4, fixed_abs, tag = 'smem constant byte address 0x4 - core index']
  #allocation1 [shape = 'u32[144,128]{1,0:T(1,128)}', space=vmem, size = 0x12000, scoped, tag = 'internal scratch']
  #allocation2 [shape = 'f32[1,2,8]{2,1,0:T(2,128)}', space=vmem, size = 0x400, scoped, tag = 'scratch operand']
  %s0 = inlined_call_operand.vmem [shape: f32[2,32], index: 0, kind: input, shape index: {}]
  %s1 = inlined_call_operand.vmem [shape: s32[2,1], index: 1, kind: input, shape index: {}]
  %s2 = inlined_call_operand.hbm [shape: f32[2,8,32], index: 2, kind: input, shape index: {}]
  %s3 = inlined_call_operand.hbm [shape: f32[2,8], index: 3, kind: output, shape index: {}]
  %s4 = sld [smem:[#allocation0]]
  $region30: #{tpu_custom_call.1} parent=0
    _
  %s6 = ssub.s32 1, %s4
  %s7 = scalar_select 0, %s6, %s4
  $region1: #{tpu_custom_call.1} parent=0
    #allocation3 [shape = 'u8[8192]{0}', space=vmem, size = 0x2000, scoped, tag = 'input window, operand 2, single buffered']
    #allocation4 [shape = 's32[1]{0}', space=sflag, size = 0x4, scoped, tag = 'scoped memory for tpu_custom_call.1']
    #allocation5 [shape = 's32[1]{0}', space=sflag, size = 0x4, scoped, tag = 'scoped memory for tpu_custom_call.1']
    #allocation6 [shape = 'u8[1024]{0}', space=vmem, size = 0x400, scoped, tag = 'output window, operand 0, single buffered']
    %8 = vsyncpa [#allocation4], 0
    %9 = vsyncpa [#allocation5], 0
    // Predicated region
    $region2: #{tpu_custom_call.1} parent=1 // pred_check
      _
    $region3: #{tpu_custom_call.1} parent=1 // pred_check_branch
      %11 = sbr.rel (0) target = $region5
    $region4: #{tpu_custom_call.1} parent=1 // pred_region
      _
    $region5: #{tpu_custom_call.1} parent=1 // pred_fallthru
      _
    // Predicated region
    $region6: #{tpu_custom_call.1} parent=1 // pred_check
      _
    $region7: #{tpu_custom_call.1} parent=1 // pred_check_branch
      %13 = sbr.rel (0) target = $region9
    $region8: #{tpu_custom_call.1} parent=1 // pred_region
      _
    $region9: #{tpu_custom_call.1} parent=1 // pred_fallthru
      _
    // Predicated region
    $region10: #{tpu_custom_call.1} parent=1 // pred_check
      _
    $region11: #{tpu_custom_call.1} parent=1 // pred_check_branch
      %15 = sbr.rel (0) target = $region13
    $region12: #{tpu_custom_call.1} parent=1 // pred_region
      %s17 = ssub.s32 256, 256
      %18 = vsyncadd [#allocation4], %s17
      %s19 = sshll.u32 [#allocation3], 4
      %s20 = int_to_ptr.vmem [resolvable:$true] %s19
      %25 = dma.hbm_to_vmem [thread:$0]  %s2, 256, %s20, [#allocation4], 128, 128, 8
    $region13: #{tpu_custom_call.1} parent=1 // pred_fallthru
      _
    // Predicated region
    $region14: #{tpu_custom_call.1} parent=1 // pred_check
      _
    $region15: #{tpu_custom_call.1} parent=1 // pred_check_branch
      %27 = sbr.rel (0) target = $region17
    $region16: #{tpu_custom_call.1} parent=1 // pred_region
      %28 = dma.done [#allocation4], 256
    $region17: #{tpu_custom_call.1} parent=1 // pred_fallthru
      _
    %v29 = vld [vmem:[%s0] sm:$0x3]
    %v30 = vld [vmem:[#allocation3] sm:$0xff]
    %v31 = vld [vmem:[#allocation3 + $0x8] sm:$0xff]
    %v34 = vunpack.c.l.s4 1966171168
    %v35 = vunpack.c.0.s8 %v34
    %v36 = vlaneseq
    %v37 = vshrl.u32 %v36, 7
    %v38 = vsub.s32 %v35, %v37
    %v39 = vrot.slane %v29, %v38
    %v40 = vcombine.high %v39, %v39
    %v42 = vunpack.c.l.s4 1966171168
    %v43 = vunpack.c.0.s8 %v42
    %v44 = vlaneseq
    %v45 = vshrl.u32 %v44, 7
    %v46 = vsub.s32 %v43, %v45
    %v47 = vrot.slane %v39, %v46
    %v49 = vunpack.c.l.s4 1966171168
    %v50 = vunpack.c.0.s8 %v49
    %v51 = vlaneseq
    %v52 = vshrl.u32 %v51, 7
    %v53 = vsub.s32 %v50, %v52
    %v54 = vrot.slane %v40, %v53
    %v55 = vlaneseq
    %v56 = vshrl.u32 %v55, 7
    %v57 = vsub.s32 0, %v56
    %v58 = vrot.slane %v47, %v57
    %v59 = vlaneseq
    %v60 = vshrl.u32 %v59, 7
    %v61 = vsub.s32 0, %v60
    %v62 = vrot.slane %v54, %v61
    %v65 = vmul.f32 %v30, %v58
    %v66 = vmul.f32 %v31, %v62
    %vm67 = vcmask 261120
    %v68 = vsel %vm67, %v65, 0.0
    %69 = vadd.xlane.f32.xlu0 %v68
    %v70 = vpop.xlane.xlu0 %69
    %v71 = vsel %vm67, %v66, 0.0
    %72 = vadd.xlane.f32.xlu0 %v71
    %v73 = vpop.xlane.xlu0 %72
    %v74 = vlaneseq
    %v75 = vand.u32 %v74, 127
    %s76 = smul.u32 0, 8
    %v77 = vstv %s76
    %v78 = vadd.s32 %v75, %v77
    %v79 = vld [vmem:[%s1] sm:$0x3]
    %80 = vset.pattern.permute.xlu0 0
    %81 = vperm.xlu0 %80, %v79
    %v82 = vpop.permute.xlu0 %81
    %vm83 = vcmp.lt.s32.totalorder %v78, %v82
    %v86 = vlaneseq
    %v87 = vshrl.u32 %v86, 7
    %v88 = vsub.s32 %v75, %v87
    %v89 = vrot.slane %v70, %v88
    %v90 = vlaneseq
    %v91 = vshrl.u32 %v90, 7
    %v92 = vsub.s32 %v75, %v91
    %v93 = vrot.slane %v73, %v92
    %vm94 = vcmask 1041409
    %v95 = vsel %vm94, %v93, %v89
    %v97 = vsel %vm83, %v95, -1e+30
    %p98 = scmp.eq.s32.totalorder 0, 0
    // Predicated region
    $region18: #{tpu_custom_call.1} parent=1 // pred_check
      %p99 = pneg %p98
    $region19: #{tpu_custom_call.1} parent=1 // pred_check_branch
      %101 = sbr.rel (%p99) target = $region21
    $region20: #{tpu_custom_call.1} parent=1 // pred_region
      %vm102 = vcmask 58368
      %v103 = vsel %vm102, %v97, -inf
      %104 = vmax.xlane.f32.xlu0 %v103
      %v105 = vpop.xlane.xlu0 %104
      %v106 = vsub.f32 %v97, %v105
      %v107 = vmul.f32 %v106, 1.442695
      %v108 = vpow.pop %v107
      %v109 = vsel %vm102, %v108, 0.0
      %110 = vadd.xlane.f32.xlu0 %v109
      %v111 = vpop.xlane.xlu0 %110
      %v112 = vrcp.pop %v111
      %v113 = vmul.f32 1.0, %v112
      %v114 = vmul.f32 %v108, %v113
      %115 = vst.msk [vmem:[#allocation6] sm:$0x3] %vm102, %v114
    $region21: #{tpu_custom_call.1} parent=1 // pred_fallthru
      _
    // Predicated region
    $region22: #{tpu_custom_call.1} parent=1 // pred_check
      _
    $region23: #{tpu_custom_call.1} parent=1 // pred_check_branch
      %117 = sbr.rel (0) target = $region25
    $region24: #{tpu_custom_call.1} parent=1 // pred_region
      %s119 = ssub.s32 32, 32
      %120 = vsyncadd [#allocation5], %s119
      %s122 = sshll.u32 [#allocation6], 4
      %s123 = int_to_ptr.vmem [resolvable:$true] %s122
      %125 = dma.vmem_to_hbm [thread:$0]  %s123, 32, %s3, [#allocation5]
    $region25: #{tpu_custom_call.1} parent=1 // pred_fallthru
      _
    // Predicated region
    $region26: #{tpu_custom_call.1} parent=1 // pred_check
      _
    $region27: #{tpu_custom_call.1} parent=1 // pred_check_branch
      %127 = sbr.rel (0) target = $region29
    $region28: #{tpu_custom_call.1} parent=1 // pred_region
      %128 = dma.done [#allocation5], 32
    $region29: #{tpu_custom_call.1} parent=1 // pred_fallthru
      _
    %129 = vsyncpa [#allocation4], 1
    %130 = vsyncpa [#allocation5], 1

</llo_original>
